<compile_context>
chip_gen: v7x
topology: tpu7x:2x2x1
jax: 0.10.0
libtpu: 0.0.40
codegen_flags: <defaults>
</compile_context>

<pallas_src>
import functools

import jax
import jax.numpy as jnp
from jax.experimental import pallas as pl
from jax.experimental.pallas import tpu as pltpu


def _round_up(x, m):
    return (x + m - 1) // m * m


# ----------------------------------------------------------------------------
# Kernel: the whole multi-head 3-layer MLP in one invocation (4 operands).
# ----------------------------------------------------------------------------
def _fused_mlp_kernel(x_ref, w1_ref, w23_ref, b_ref, mu_ref, *, out_cols):
    x = x_ref[...]                        # [B, D_in]
    b = b_ref[...]                        # [3, T*H]  (row 2 = b3 zero-padded)

    # Layer 1: one lane-dense matmul covering all heads (N = T*H).
    h1 = jnp.dot(x, w1_ref[...], preferred_element_type=jnp.float32) + b[0:1, :]
    h1 = jnp.maximum(h1, 0.0)             # [B, T*H]

    # Layer 2: block-diagonal weights -> one matmul, heads stay independent.
    h2 = jnp.dot(h1, w23_ref[0], preferred_element_type=jnp.float32) + b[1:2, :]
    h2 = jnp.maximum(h2, 0.0)             # [B, T*H]

    # Layer 3 + tanh.  w3 columns are zero-padded to `out_cols` (a 128-lane
    # multiple), so the output store is full/unmasked; padded cols = tanh(0)=0.
    w3 = w23_ref[1]                       # [T*H, T*H], valid cols: first T*D_out
    out = (jnp.dot(h2, w3[:, :out_cols], preferred_element_type=jnp.float32)
           + b[2:3, :out_cols])
    mu_ref[...] = jnp.tanh(out).astype(mu_ref.dtype)


# ----------------------------------------------------------------------------
# One-time parameter fusion + jitted forward factory
# ----------------------------------------------------------------------------
def _block_diag(w):
    """Stacked per-head matrices [T, a, b] -> block-diagonal [T*a, T*b]."""
    T, a, b = w.shape
    eye = jnp.eye(T, dtype=w.dtype)
    return (eye[:, None, :, None] * w[:, :, None, :]).reshape(T * a, T * b)


def make_multi_token_head(params, *, stddev=0.1):
    """Fuse per-head params ONCE; return forward(x) -> (mu, std), [T, B, D_out]."""
    w1, b1 = params["w1"], params["b1"]
    w2, b2 = params["w2"], params["b2"]
    w3, b3 = params["w3"], params["b3"]

    T, d_in, hidden = w1.shape
    d_out = w3.shape[-1]
    TH = T * hidden
    assert d_out <= hidden, "packed-w23 layout assumes output_size <= hidden_size"
    # Lane-dense output slab width (multiple of 128 when it fits inside T*H).
    out_cols = min(TH, _round_up(T * d_out, 128))

    # ---- parameter layout fusion: computed once here, NOT per forward call ----
    w1_cat = jnp.transpose(w1, (1, 0, 2)).reshape(d_in, TH)              # [D_in, T*H]
    w2_bd = _block_diag(w2)                                              # [T*H, T*H]
    w3_pad = jnp.zeros((TH, TH), w3.dtype).at[:, : T * d_out].set(_block_diag(w3))
    w23 = jnp.stack([w2_bd, w3_pad])                                     # [2, T*H, T*H]
    b3_pad = jnp.zeros((TH,), b3.dtype).at[: T * d_out].set(b3.reshape(-1))
    biases = jnp.stack([b1.reshape(-1), b2.reshape(-1), b3_pad])         # [3, T*H]

    vmem = pl.BlockSpec(memory_space=pltpu.MemorySpace.VMEM)
    kernel = functools.partial(_fused_mlp_kernel, out_cols=out_cols)

    @jax.jit
    def _forward(x, w1_cat, w23, biases):
        B = x.shape[0]
        cost = pl.CostEstimate(
            flops=2 * B * (d_in * TH + TH * TH + TH * out_cols),
            transcendentals=B * out_cols,
            bytes_accessed=4 * (B * d_in + d_in * TH + 2 * TH * TH
                                + 3 * TH + B * out_cols),
        )
        mu_pad = pl.pallas_call(
            kernel,
            out_shape=jax.ShapeDtypeStruct((B, out_cols), x.dtype),
            in_specs=[vmem] * 4,           # full arrays resident in VMEM, no grid
            out_specs=vmem,
            cost_estimate=cost,
        )(x, w1_cat, w23, biases)
        # Slice / reshape / transpose / full_like fuse with the call in this jit.
        mu = mu_pad[:, : T * d_out].reshape(B, T, d_out).transpose(1, 0, 2)
        # TODO(synk): TruncatedNormal distribution object (sampling / log_prob)
        # has no Pallas equivalent; we return its parameters (mu, std) instead.
        std = jnp.full_like(mu, stddev)
        return mu, std

    return lambda x: _forward(x, w1_cat, w23, biases)


# ----------------------------------------------------------------------------
# Parameter init (PyTorch-Linear-style uniform(-1/sqrt(fan_in), +1/sqrt(fan_in)))
# ----------------------------------------------------------------------------
def init_params(key, *, num_tokens, input_size, output_size, hidden_size):
    def linear(k, fan_in, fan_out):
        kw, kb = jax.random.split(k)
        bound = 1.0 / jnp.sqrt(fan_in)
        w = jax.random.uniform(kw, (num_tokens, fan_in, fan_out),
                               jnp.float32, -bound, bound)
        b = jax.random.uniform(kb, (num_tokens, fan_out),
                               jnp.float32, -bound, bound)
        return w, b

    k1, k2, k3 = jax.random.split(key, 3)
    w1, b1 = linear(k1, input_size, hidden_size)
    w2, b2 = linear(k2, hidden_size, hidden_size)
    w3, b3 = linear(k3, hidden_size, output_size)
    return dict(w1=w1, b1=b1, w2=w2, b2=b2, w3=w3, b3=b3)


def _reference(x, params):
    """Pure-JAX per-head reference (matches the PyTorch module)."""
    def one_head(w1, b1, w2, b2, w3, b3):
        h1 = jnp.maximum(x @ w1 + b1, 0.0)
        h2 = jnp.maximum(h1 @ w2 + b2, 0.0)
        return jnp.tanh(h2 @ w3 + b3)
    return jax.vmap(one_head)(params["w1"], params["b1"],
                              params["w2"], params["b2"],
                              params["w3"], params["b3"])


if __name__ == "__main__":
    # Small shapes consistent with the module's forward:
    #   x : transformer decoder output features, [batch, input_size]
    batch, input_size, hidden_size, output_size, num_tokens = 8, 32, 64, 16, 3

    key = jax.random.PRNGKey(0)
    kx, kp = jax.random.split(key)
    x = jax.random.normal(kx, (batch, input_size), jnp.float32)
    params = init_params(kp, num_tokens=num_tokens, input_size=input_size,
                         output_size=output_size, hidden_size=hidden_size)

    forward = make_multi_token_head(params, stddev=0.1)   # fuse params once
    mu, std = forward(x)
    jax.block_until_ready(mu)
    jax.block_until_ready(std)

    ref = _reference(x, params)
    assert mu.shape == (num_tokens, batch, output_size)
    assert std.shape == mu.shape
    assert jnp.allclose(mu, ref, atol=1e-5, rtol=1e-5), "mismatch vs reference"
    assert jnp.allclose(std, jnp.full_like(ref, 0.1)), "std mismatch"

    print("KERNEL_OK")
</pallas_src>

<mosaic_0001>
module attributes {stable_mosaic.version = 11 : i64} {
  func.func @_fused_mlp_kernel(%arg0: memref<8x32xf32, #tpu.memory_space<vmem>>, %arg1: memref<32x192xf32, #tpu.memory_space<vmem>>, %arg2: memref<2x192x192xf32, #tpu.memory_space<vmem>>, %arg3: memref<3x192xf32, #tpu.memory_space<vmem>>, %arg4: memref<8x128xf32, #tpu.memory_space<vmem>>) attributes {dimension_semantics = [], scalar_prefetch = 0 : i64, scratch_operands = 0 : i64, tpu.core_type = #tpu.core_type<tc>} {
    %c0 = arith.constant 0 : index
    %c0_0 = arith.constant 0 : index
    %0 = vector.load %arg0[%c0, %c0_0] : memref<8x32xf32, #tpu.memory_space<vmem>>, vector<8x32xf32>
    %c0_1 = arith.constant 0 : index
    %c0_2 = arith.constant 0 : index
    %1 = vector.load %arg3[%c0_1, %c0_2] : memref<3x192xf32, #tpu.memory_space<vmem>>, vector<3x192xf32>
    %c0_3 = arith.constant 0 : index
    %c0_4 = arith.constant 0 : index
    %2 = vector.load %arg1[%c0_3, %c0_4] : memref<32x192xf32, #tpu.memory_space<vmem>>, vector<32x192xf32>
    %cst = arith.constant dense<0.000000e+00> : vector<8x192xf32>
    %3 = tpu.matmul %0, %2, %cst {dimension_numbers = #tpu.dot_dimension_numbers<[1], [0], [0], [1], [0, 0, 1, 1], [], []>} : vector<8x32xf32>, vector<32x192xf32>, vector<8x192xf32> -> vector<8x192xf32>
    %4 = vector.extract_strided_slice %1 {offsets = [0, 0], sizes = [1, 192], strides = [1, 1]} : vector<3x192xf32> to vector<1x192xf32>
    %5 = vector.broadcast %4 : vector<1x192xf32> to vector<8x192xf32>
    %6 = arith.addf %3, %5 : vector<8x192xf32>
    %cst_5 = arith.constant 0.000000e+00 : f32
    %7 = vector.broadcast %cst_5 : f32 to vector<8x192xf32>
    %8 = arith.maximumf %6, %7 : vector<8x192xf32>
    %c0_6 = arith.constant 0 : index
    %c0_7 = arith.constant 0 : index
    %c0_8 = arith.constant 0 : index
    %9 = vector.load %arg2[%c0_6, %c0_7, %c0_8] : memref<2x192x192xf32, #tpu.memory_space<vmem>>, vector<1x192x192xf32>
    %10 = vector.shape_cast %9 : vector<1x192x192xf32> to vector<192x192xf32>
    %cst_9 = arith.constant dense<0.000000e+00> : vector<8x192xf32>
    %11 = tpu.matmul %8, %10, %cst_9 {dimension_numbers = #tpu.dot_dimension_numbers<[1], [0], [0], [1], [0, 0, 1, 1], [], []>} : vector<8x192xf32>, vector<192x192xf32>, vector<8x192xf32> -> vector<8x192xf32>
    %12 = vector.extract_strided_slice %1 {offsets = [1, 0], sizes = [1, 192], strides = [1, 1]} : vector<3x192xf32> to vector<1x192xf32>
    %13 = vector.broadcast %12 : vector<1x192xf32> to vector<8x192xf32>
    %14 = arith.addf %11, %13 : vector<8x192xf32>
    %cst_10 = arith.constant 0.000000e+00 : f32
    %15 = vector.broadcast %cst_10 : f32 to vector<8x192xf32>
    %16 = arith.maximumf %14, %15 : vector<8x192xf32>
    %c1 = arith.constant 1 : index
    %c0_11 = arith.constant 0 : index
    %c0_12 = arith.constant 0 : index
    %17 = vector.load %arg2[%c1, %c0_11, %c0_12] : memref<2x192x192xf32, #tpu.memory_space<vmem>>, vector<1x192x192xf32>
    %18 = vector.shape_cast %17 : vector<1x192x192xf32> to vector<192x192xf32>
    %19 = vector.extract_strided_slice %18 {offsets = [0, 0], sizes = [192, 128], strides = [1, 1]} : vector<192x192xf32> to vector<192x128xf32>
    %cst_13 = arith.constant dense<0.000000e+00> : vector<8x128xf32>
    %20 = tpu.matmul %16, %19, %cst_13 {dimension_numbers = #tpu.dot_dimension_numbers<[1], [0], [0], [1], [0, 0, 1, 1], [], []>} : vector<8x192xf32>, vector<192x128xf32>, vector<8x128xf32> -> vector<8x128xf32>
    %21 = vector.extract_strided_slice %1 {offsets = [2, 0], sizes = [1, 128], strides = [1, 1]} : vector<3x192xf32> to vector<1x128xf32>
    %22 = vector.broadcast %21 : vector<1x128xf32> to vector<8x128xf32>
    %23 = arith.addf %20, %22 : vector<8x128xf32>
    %24 = math.tanh %23 : vector<8x128xf32>
    %c0_14 = arith.constant 0 : index
    %c0_15 = arith.constant 0 : index
    %25 = vector.load %arg4[%c0_14, %c0_15] : memref<8x128xf32, #tpu.memory_space<vmem>>, vector<8x128xf32>
    tpu.vector_store %arg4[%c0_14, %c0_15], %24 {strides = array<i32>} : memref<8x128xf32, #tpu.memory_space<vmem>>, vector<8x128xf32>,
    return
  }
}

</mosaic_0001>

<llo_original>
// kernel: _forward.1
$region0: #{_forward.1}
  #allocation0 [shape = 'u32[]', space=smem, size = 0x4, offset = 0x4, fixed_abs, tag = 'smem constant byte address 0x4 - core index']
  #allocation1 [shape = 'u32[144,128]{1,0:T(1,128)}', space=vmem, size = 0x12000, scoped, tag = 'internal scratch']
  %s0 = inlined_call_operand.hbm [shape: f32[8,32], index: 0, kind: input, shape index: {}]
  %s1 = inlined_call_operand.hbm [shape: f32[32,192], index: 1, kind: input, shape index: {}]
  %s2 = inlined_call_operand.hbm [shape: f32[2,192,192], index: 2, kind: input, shape index: {}]
  %s3 = inlined_call_operand.vmem [shape: f32[3,192], index: 3, kind: input, shape index: {}]
  %s4 = inlined_call_operand.vmem [shape: f32[8,128], index: 4, kind: output, shape index: {}]
  %s5 = sld [smem:[#allocation0]]
  $region38: #{_forward.1} parent=0
    _
  %s7 = ssub.s32 1, %s5
  %s8 = scalar_select 0, %s7, %s5
  $region1: #{_forward.1} parent=0
    #allocation2 [shape = 'u8[4096]{0}', space=vmem, size = 0x1000, scoped, tag = 'input window, operand 0, single buffered']
    #allocation3 [shape = 's32[1]{0}', space=sflag, size = 0x4, scoped, tag = 'scoped memory for _forward.1']
    #allocation4 [shape = 'u8[32768]{0}', space=vmem, size = 0x8000, scoped, tag = 'input window, operand 1, single buffered']
    #allocation5 [shape = 's32[1]{0}', space=sflag, size = 0x4, scoped, tag = 'scoped memory for _forward.1']
    #allocation6 [shape = 'u8[393216]{0}', space=vmem, size = 0x60000, scoped, tag = 'input window, operand 2, single buffered']
    %9 = vsyncpa [#allocation3], 0
    %10 = vsyncpa [#allocation5], 0
    // Predicated region
    $region2: #{_forward.1} parent=1 // pred_check
      _
    $region3: #{_forward.1} parent=1 // pred_check_branch
      %12 = sbr.rel (0) target = $region5
    $region4: #{_forward.1} parent=1 // pred_region
      %s14 = ssub.s32 128, 128
      %15 = vsyncadd [#allocation3], %s14
      %s17 = sshll.u32 [#allocation2], 4
      %s18 = int_to_ptr.vmem [resolvable:$true] %s17
      %20 = dma.hbm_to_vmem [thread:$0]  %s0, 128, %s18, [#allocation3]
    $region5: #{_forward.1} parent=1 // pred_fallthru
      _
    // Predicated region
    $region6: #{_forward.1} parent=1 // pred_check
      _
    $region7: #{_forward.1} parent=1 // pred_check_branch
      %22 = sbr.rel (0) target = $region9
    $region8: #{_forward.1} parent=1 // pred_region
      %s24 = ssub.s32 1024, 1024
      %25 = vsyncadd [#allocation5], %s24
      %s26 = sshll.u32 [#allocation4], 4
      %s27 = int_to_ptr.vmem [resolvable:$true] %s26
      %32 = dma.hbm_to_vmem [thread:$0]  %s1, 1024, %s27, [#allocation5], 256, 256, 16
    $region9: #{_forward.1} parent=1 // pred_fallthru
      _
    // Predicated region
    $region10: #{_forward.1} parent=1 // pred_check
      _
    $region11: #{_forward.1} parent=1 // pred_check_branch
      %34 = sbr.rel (0) target = $region13
    $region12: #{_forward.1} parent=1 // pred_region
      %s36 = ssub.s32 12288, 12288
      %37 = vsyncadd [#allocation5], %s36
      %s38 = sshll.u32 [#allocation6], 4
      %s39 = int_to_ptr.vmem [resolvable:$true] %s38
      %44 = dma.hbm_to_vmem [thread:$0]  %s2, 12288, %s39, [#allocation5], 256, 256, 16
    $region13: #{_forward.1} parent=1 // pred_fallthru
      _
    // Predicated region
    $region14: #{_forward.1} parent=1 // pred_check
      _
    $region15: #{_forward.1} parent=1 // pred_check_branch
      %46 = sbr.rel (0) target = $region17
    $region16: #{_forward.1} parent=1 // pred_region
      _
    $region17: #{_forward.1} parent=1 // pred_fallthru
      _
    // Predicated region
    $region18: #{_forward.1} parent=1 // pred_check
      _
    $region19: #{_forward.1} parent=1 // pred_check_branch
      %48 = sbr.rel (0) target = $region21
    $region20: #{_forward.1} parent=1 // pred_region
      %49 = dma.done [#allocation3], 128
    $region21: #{_forward.1} parent=1 // pred_fallthru
      _
    // Predicated region
    $region22: #{_forward.1} parent=1 // pred_check
      _
    $region23: #{_forward.1} parent=1 // pred_check_branch
      %51 = sbr.rel (0) target = $region25
    $region24: #{_forward.1} parent=1 // pred_region
      %52 = dma.done [#allocation5], 1024
    $region25: #{_forward.1} parent=1 // pred_fallthru
      _
    // Predicated region
    $region26: #{_forward.1} parent=1 // pred_check
      _
    $region27: #{_forward.1} parent=1 // pred_check_branch
      %54 = sbr.rel (0) target = $region29
    $region28: #{_forward.1} parent=1 // pred_region
      %55 = dma.done [#allocation5], 12288
    $region29: #{_forward.1} parent=1 // pred_fallthru
      _
    %v56 = vld [vmem:[#allocation2] sm:$0xff]
    %v57 = vld [vmem:[%s3] sm:$0x77]
    %v58 = vld [vmem:[#allocation4] sm:$0xff]
    %v59 = vld [vmem:[#allocation4 + $0x8] sm:$0xff]
    %v60 = vld [vmem:[#allocation4 + $0x10] sm:$0xff]
    %v61 = vld [vmem:[#allocation4 + $0x18] sm:$0xff]
    %v62 = vld [vmem:[#allocation4 + $0x20] sm:$0xff]
    %v63 = vld [vmem:[#allocation4 + $0x28] sm:$0xff]
    %v64 = vld [vmem:[#allocation4 + $0x30] sm:$0xff]
    %v65 = vld [vmem:[#allocation4 + $0x38] sm:$0xff]
    %v67 = vlaneseq
    %v68 = vshrl.u32 %v67, 7
    %v69 = vsub.s32 0, %v68
    %v70 = vrot.slane %v57, %v69
    %v71 = vlaneseq
    %v72 = vshrl.u32 %v71, 7
    %v73 = vsub.s32 4, %v72
    %v74 = vrot.slane %v57, %v73
    %v77 = vlaneseq
    %v78 = vshrl.u32 %v77, 7
    %v79 = vsub.s32 0, %v78
    %v80 = vrot.slane %v70, %v79
    %v81 = vlaneseq
    %v82 = vshrl.u32 %v81, 7
    %v83 = vsub.s32 0, %v82
    %v84 = vrot.slane %v74, %v83
    %vm85 = vcmask 261120
    %v87 = vsel %vm85, %v56, 0
    %89 = vmatprep.subr.mxu0 %v59
    %90 = vmatpush1.msra.mxu0 %v58
    %91 = vmatprep.subr.mxu0 %v61
    %92 = vmatpush1.msra.mxu0 %v60
    %93 = vmatprep.subr.mxu0 %v63
    %94 = vmatpush1.msra.mxu0 %v62
    %95 = vmatprep.subr.mxu0 %v65
    %96 = vmatpush1.msra.mxu0 %v64
    %97 = vmatprep.subr.mxu0 0.0
    %98 = vmatpush1.msra.mxu0 0.0
    %99 = vmatprep.subr.mxu0 0.0
    %100 = vmatpush1.msra.mxu0 0.0
    %101 = vmatprep.subr.mxu0 0.0
    %102 = vmatpush1.msra.mxu0 0.0
    %103 = vmatprep.subr.mxu0 0.0
    %104 = vmatpush1.msra.mxu0 0.0
    %105 = vmatprep.subr.mxu0 0.0
    %106 = vmatpush1.msra.mxu0 0.0
    %107 = vmatprep.subr.mxu0 0.0
    %108 = vmatpush1.msra.mxu0 0.0
    %109 = vmatprep.subr.mxu0 0.0
    %110 = vmatpush1.msra.mxu0 0.0
    %111 = vmatprep.subr.mxu0 0.0
    %112 = vmatpush1.msra.mxu0 0.0
    %113 = vmatprep.subr.mxu0 0.0
    %114 = vmatpush1.msra.mxu0 0.0
    %115 = vmatprep.subr.mxu0 0.0
    %116 = vmatpush1.msra.mxu0 0.0
    %117 = vmatprep.subr.mxu0 0.0
    %118 = vmatpush1.msra.mxu0 0.0
    %119 = vmatprep.subr.mxu0 0.0
    %120 = vmatpush1.msra.mxu0 0.0
    %121 = vmatprep.subr.mxu0 0.0
    %122 = vmatpush1.msra.mxu0 0.0
    %123 = vmatprep.subr.mxu0 0.0
    %124 = vmatpush1.msra.mxu0 0.0
    %125 = vmatprep.subr.mxu0 0.0
    %126 = vmatpush1.msra.mxu0 0.0
    %127 = vmatprep.subr.mxu0 0.0
    %128 = vmatpush1.msra.mxu0 0.0
    %129 = vmatprep.subr.mxu0 0.0
    %130 = vmatpush1.msra.mxu0 0.0
    %131 = vmatprep.subr.mxu0 0.0
    %132 = vmatpush1.msra.mxu0 0.0
    %133 = vmatprep.subr.mxu0 0.0
    %134 = vmatpush1.msra.mxu0 0.0
    %135 = vmatprep.subr.mxu0 0.0
    %136 = vmatpush1.msra.mxu0 0.0
    %137 = vmatprep.subr.mxu0 0.0
    %138 = vmatpush1.msra.mxu0 0.0
    %139 = vmatprep.subr.mxu0 0.0
    %140 = vmatpush1.msra.mxu0 0.0
    %141 = vmatprep.subr.mxu0 0.0
    %142 = vmatpush1.msra.mxu0 0.0
    %143 = vmatprep.subr.mxu0 0.0
    %144 = vmatpush1.msra.mxu0 0.0
    %145 = vmatprep.subr.mxu0 0.0
    %146 = vmatpush1.msra.mxu0 0.0
    %147 = vmatprep.subr.mxu0 0.0
    %148 = vmatpush1.msra.mxu0 0.0
    %149 = vmatprep.subr.mxu0 0.0
    %150 = vmatpush1.msra.mxu0 0.0
    %151 = vmatprep.subr.mxu0 0.0
    %152 = vmatpush1.msra.mxu0 0.0
    %153 = vmatprep.mubr.f32.mxu0 0.0
    %154 = vmatmul.mubr.f32.gmra.mrb[0].mxu0 %v87
    %v155 = vpop.f32.mrb[0].mxu0
    %v156 = vadd.f32 %v80, %v155
    %v157 = vpop.f32.mrb[0].mxu0
    %v158 = vadd.f32 %v84, %v157
    %159 = vdwg.mxu0
    %v160 = vmax.f32 %v156, 0.0
    %v161 = vmax.f32 %v158, 0.0
    %v162 = vld [vmem:[#allocation6] sm:$0xff]
    %v163 = vld [vmem:[#allocation6 + $0x8] sm:$0xff]
    %v164 = vld [vmem:[#allocation6 + $0x10] sm:$0xff]
    %v165 = vld [vmem:[#allocation6 + $0x18] sm:$0xff]
    %v166 = vld [vmem:[#allocation6 + $0x20] sm:$0xff]
    %v167 = vld [vmem:[#allocation6 + $0x28] sm:$0xff]
    %v168 = vld [vmem:[#allocation6 + $0x30] sm:$0xff]
    %v169 = vld [vmem:[#allocation6 + $0x38] sm:$0xff]
    %v170 = vld [vmem:[#allocation6 + $0x40] sm:$0xff]
    %v171 = vld [vmem:[#allocation6 + $0x48] sm:$0xff]
    %v172 = vld [vmem:[#allocation6 + $0x50] sm:$0xff]
    %v173 = vld [vmem:[#allocation6 + $0x58] sm:$0xff]
    %v174 = vld [vmem:[#allocation6 + $0x60] sm:$0xff]
    %v175 = vld [vmem:[#allocation6 + $0x68] sm:$0xff]
    %v176 = vld [vmem:[#allocation6 + $0x70] sm:$0xff]
    %v177 = vld [vmem:[#allocation6 + $0x78] sm:$0xff]
    %v178 = vld [vmem:[#allocation6 + $0x80] sm:$0xff]
    %v179 = vld [vmem:[#allocation6 + $0x88] sm:$0xff]
    %v180 = vld [vmem:[#allocation6 + $0x90] sm:$0xff]
    %v181 = vld [vmem:[#allocation6 + $0x98] sm:$0xff]
    %v182 = vld [vmem:[#allocation6 + $0xa0] sm:$0xff]
    %v183 = vld [vmem:[#allocation6 + $0xa8] sm:$0xff]
    %v184 = vld [vmem:[#allocation6 + $0xb0] sm:$0xff]
    %v185 = vld [vmem:[#allocation6 + $0xb8] sm:$0xff]
    %v186 = vld [vmem:[#allocation6 + $0xc0] sm:$0xff]
    %v187 = vld [vmem:[#allocation6 + $0xc8] sm:$0xff]
    %v188 = vld [vmem:[#allocation6 + $0xd0] sm:$0xff]
    %v189 = vld [vmem:[#allocation6 + $0xd8] sm:$0xff]
    %v190 = vld [vmem:[#allocation6 + $0xe0] sm:$0xff]
    %v191 = vld [vmem:[#allocation6 + $0xe8] sm:$0xff]
    %v192 = vld [vmem:[#allocation6 + $0xf0] sm:$0xff]
    %v193 = vld [vmem:[#allocation6 + $0xf8] sm:$0xff]
    %v194 = vld [vmem:[#allocation6 + $0x100] sm:$0xff]
    %v195 = vld [vmem:[#allocation6 + $0x108] sm:$0xff]
    %v196 = vld [vmem:[#allocation6 + $0x110] sm:$0xff]
    %v197 = vld [vmem:[#allocation6 + $0x118] sm:$0xff]
    %v198 = vld [vmem:[#allocation6 + $0x120] sm:$0xff]
    %v199 = vld [vmem:[#allocation6 + $0x128] sm:$0xff]
    %v200 = vld [vmem:[#allocation6 + $0x130] sm:$0xff]
    %v201 = vld [vmem:[#allocation6 + $0x138] sm:$0xff]
    %v202 = vld [vmem:[#allocation6 + $0x140] sm:$0xff]
    %v203 = vld [vmem:[#allocation6 + $0x148] sm:$0xff]
    %v204 = vld [vmem:[#allocation6 + $0x150] sm:$0xff]
    %v205 = vld [vmem:[#allocation6 + $0x158] sm:$0xff]
    %v206 = vld [vmem:[#allocation6 + $0x160] sm:$0xff]
    %v207 = vld [vmem:[#allocation6 + $0x168] sm:$0xff]
    %v208 = vld [vmem:[#allocation6 + $0x170] sm:$0xff]
    %v209 = vld [vmem:[#allocation6 + $0x178] sm:$0xff]
    %v210 = vlaneseq
    %v211 = vshrl.u32 %v210, 7
    %v212 = vsub.s32 1, %v211
    %v213 = vrot.slane %v57, %v212
    %v214 = vlaneseq
    %v215 = vshrl.u32 %v214, 7
    %v216 = vsub.s32 5, %v215
    %v217 = vrot.slane %v57, %v216
    %v220 = vlaneseq
    %v221 = vshrl.u32 %v220, 7
    %v222 = vsub.s32 1, %v221
    %v223 = vrot.slane %v213, %v222
    %v224 = vlaneseq
    %v225 = vshrl.u32 %v224, 7
    %v226 = vsub.s32 1, %v225
    %v227 = vrot.slane %v217, %v226
    %vm228 = vcmask 523264
    %v230 = vsel %vm228, %v161, 0
    %232 = vmatprep.subr.mxu0 %v163
    %233 = vmatpush1.msra.mxu0 %v162
    %234 = vmatprep.subr.mxu0 %v165
    %235 = vmatpush1.msra.mxu0 %v164
    %236 = vmatprep.subr.mxu0 %v167
    %237 = vmatpush1.msra.mxu0 %v166
    %238 = vmatprep.subr.mxu0 %v169
    %239 = vmatpush1.msra.mxu0 %v168
    %240 = vmatprep.subr.mxu0 %v171
    %241 = vmatpush1.msra.mxu0 %v170
    %242 = vmatprep.subr.mxu0 %v173
    %243 = vmatpush1.msra.mxu0 %v172
    %244 = vmatprep.subr.mxu0 %v175
    %245 = vmatpush1.msra.mxu0 %v174
    %246 = vmatprep.subr.mxu0 %v177
    %247 = vmatpush1.msra.mxu0 %v176
    %248 = vmatprep.subr.mxu0 %v179
    %249 = vmatpush1.msra.mxu0 %v178
    %250 = vmatprep.subr.mxu0 %v181
    %251 = vmatpush1.msra.mxu0 %v180
    %252 = vmatprep.subr.mxu0 %v183
    %253 = vmatpush1.msra.mxu0 %v182
    %254 = vmatprep.subr.mxu0 %v185
    %255 = vmatpush1.msra.mxu0 %v184
    %256 = vmatprep.subr.mxu0 %v187
    %257 = vmatpush1.msra.mxu0 %v186
    %258 = vmatprep.subr.mxu0 %v189
    %259 = vmatpush1.msra.mxu0 %v188
    %260 = vmatprep.subr.mxu0 %v191
    %261 = vmatpush1.msra.mxu0 %v190
    %262 = vmatprep.subr.mxu0 %v193
    %263 = vmatpush1.msra.mxu0 %v192
    %264 = vmatprep.subr.mxu0 %v195
    %265 = vmatpush1.msra.mxu0 %v194
    %266 = vmatprep.subr.mxu0 %v197
    %267 = vmatpush1.msra.mxu0 %v196
    %268 = vmatprep.subr.mxu0 %v199
    %269 = vmatpush1.msra.mxu0 %v198
    %270 = vmatprep.subr.mxu0 %v201
    %271 = vmatpush1.msra.mxu0 %v200
    %272 = vmatprep.subr.mxu0 %v203
    %273 = vmatpush1.msra.mxu0 %v202
    %274 = vmatprep.subr.mxu0 %v205
    %275 = vmatpush1.msra.mxu0 %v204
    %276 = vmatprep.subr.mxu0 %v207
    %277 = vmatpush1.msra.mxu0 %v206
    %278 = vmatprep.subr.mxu0 %v209
    %279 = vmatpush1.msra.mxu0 %v208
    %280 = vmatprep.subr.mxu0 0.0
    %281 = vmatpush1.msra.mxu0 0.0
    %282 = vmatprep.subr.mxu0 0.0
    %283 = vmatpush1.msra.mxu0 0.0
    %284 = vmatprep.subr.mxu0 0.0
    %285 = vmatpush1.msra.mxu0 0.0
    %286 = vmatprep.subr.mxu0 0.0
    %287 = vmatpush1.msra.mxu0 0.0
    %288 = vmatprep.subr.mxu0 0.0
    %289 = vmatpush1.msra.mxu0 0.0
    %290 = vmatprep.subr.mxu0 0.0
    %291 = vmatpush1.msra.mxu0 0.0
    %292 = vmatprep.subr.mxu0 0.0
    %293 = vmatpush1.msra.mxu0 0.0
    %294 = vmatprep.subr.mxu0 0.0
    %295 = vmatpush1.msra.mxu0 0.0
    %296 = vmatprep.mubr.f32.mxu0 %v230
    %297 = vmatmul.mubr.f32.gmra.mrb[0].mxu0 %v160
    %v298 = vpop.f32.mrb[0].mxu0
    %v299 = vadd.f32 %v223, %v298
    %v300 = vpop.f32.mrb[0].mxu0
    %v301 = vadd.f32 %v227, %v300
    %302 = vdwg.mxu0
    %v303 = vmax.f32 %v299, 0.0
    %v304 = vmax.f32 %v301, 0.0
    %s305 = scalar_lea.vmem [#allocation6], 384
    %v306 = vld [vmem:[%s305] sm:$0xff]
    %v307 = vld [vmem:[%s305 + $0x10] sm:$0xff]
    %v308 = vld [vmem:[%s305 + $0x20] sm:$0xff]
    %v309 = vld [vmem:[%s305 + $0x30] sm:$0xff]
    %v310 = vld [vmem:[%s305 + $0x40] sm:$0xff]
    %v311 = vld [vmem:[%s305 + $0x50] sm:$0xff]
    %v312 = vld [vmem:[%s305 + $0x60] sm:$0xff]
    %v313 = vld [vmem:[%s305 + $0x70] sm:$0xff]
    %v314 = vld [vmem:[%s305 + $0x80] sm:$0xff]
    %v315 = vld [vmem:[%s305 + $0x90] sm:$0xff]
    %v316 = vld [vmem:[%s305 + $0xa0] sm:$0xff]
    %v317 = vld [vmem:[%s305 + $0xb0] sm:$0xff]
    %v318 = vld [vmem:[%s305 + $0xc0] sm:$0xff]
    %v319 = vld [vmem:[%s305 + $0xd0] sm:$0xff]
    %v320 = vld [vmem:[%s305 + $0xe0] sm:$0xff]
    %v321 = vld [vmem:[%s305 + $0xf0] sm:$0xff]
    %v322 = vld [vmem:[%s305 + $0x100] sm:$0xff]
    %v323 = vld [vmem:[%s305 + $0x110] sm:$0xff]
    %v324 = vld [vmem:[%s305 + $0x120] sm:$0xff]
    %v325 = vld [vmem:[%s305 + $0x130] sm:$0xff]
    %v326 = vld [vmem:[%s305 + $0x140] sm:$0xff]
    %v327 = vld [vmem:[%s305 + $0x150] sm:$0xff]
    %v328 = vld [vmem:[%s305 + $0x160] sm:$0xff]
    %v329 = vld [vmem:[%s305 + $0x170] sm:$0xff]
    %v330 = vlaneseq
    %v331 = vshrl.u32 %v330, 7
    %v332 = vsub.s32 2, %v331
    %v333 = vrot.slane %v57, %v332
    %v335 = vsel %vm228, %v304, 0
    %337 = vmatprep.subr.mxu0 0.0
    %338 = vmatpush1.msra.mxu0 %v306
    %339 = vmatprep.subr.mxu0 0.0
    %340 = vmatpush1.msra.mxu0 %v307
    %341 = vmatprep.subr.mxu0 0.0
    %342 = vmatpush1.msra.mxu0 %v308
    %343 = vmatprep.subr.mxu0 0.0
    %344 = vmatpush1.msra.mxu0 %v309
    %345 = vmatprep.subr.mxu0 0.0
    %346 = vmatpush1.msra.mxu0 %v310
    %347 = vmatprep.subr.mxu0 0.0
    %348 = vmatpush1.msra.mxu0 %v311
    %349 = vmatprep.subr.mxu0 0.0
    %350 = vmatpush1.msra.mxu0 %v312
    %351 = vmatprep.subr.mxu0 0.0
    %352 = vmatpush1.msra.mxu0 %v313
    %353 = vmatprep.subr.mxu0 0.0
    %354 = vmatpush1.msra.mxu0 %v314
    %355 = vmatprep.subr.mxu0 0.0
    %356 = vmatpush1.msra.mxu0 %v315
    %357 = vmatprep.subr.mxu0 0.0
    %358 = vmatpush1.msra.mxu0 %v316
    %359 = vmatprep.subr.mxu0 0.0
    %360 = vmatpush1.msra.mxu0 %v317
    %361 = vmatprep.subr.mxu0 0.0
    %362 = vmatpush1.msra.mxu0 %v318
    %363 = vmatprep.subr.mxu0 0.0
    %364 = vmatpush1.msra.mxu0 %v319
    %365 = vmatprep.subr.mxu0 0.0
    %366 = vmatpush1.msra.mxu0 %v320
    %367 = vmatprep.subr.mxu0 0.0
    %368 = vmatpush1.msra.mxu0 %v321
    %369 = vmatprep.subr.mxu0 0.0
    %370 = vmatpush1.msra.mxu0 %v322
    %371 = vmatprep.subr.mxu0 0.0
    %372 = vmatpush1.msra.mxu0 %v323
    %373 = vmatprep.subr.mxu0 0.0
    %374 = vmatpush1.msra.mxu0 %v324
    %375 = vmatprep.subr.mxu0 0.0
    %376 = vmatpush1.msra.mxu0 %v325
    %377 = vmatprep.subr.mxu0 0.0
    %378 = vmatpush1.msra.mxu0 %v326
    %379 = vmatprep.subr.mxu0 0.0
    %380 = vmatpush1.msra.mxu0 %v327
    %381 = vmatprep.subr.mxu0 0.0
    %382 = vmatpush1.msra.mxu0 %v328
    %383 = vmatprep.subr.mxu0 0.0
    %384 = vmatpush1.msra.mxu0 %v329
    %385 = vmatprep.subr.mxu0 0.0
    %386 = vmatpush1.msra.mxu0 0.0
    %387 = vmatprep.subr.mxu0 0.0
    %388 = vmatpush1.msra.mxu0 0.0
    %389 = vmatprep.subr.mxu0 0.0
    %390 = vmatpush1.msra.mxu0 0.0
    %391 = vmatprep.subr.mxu0 0.0
    %392 = vmatpush1.msra.mxu0 0.0
    %393 = vmatprep.subr.mxu0 0.0
    %394 = vmatpush1.msra.mxu0 0.0
    %395 = vmatprep.subr.mxu0 0.0
    %396 = vmatpush1.msra.mxu0 0.0
    %397 = vmatprep.subr.mxu0 0.0
    %398 = vmatpush1.msra.mxu0 0.0
    %399 = vmatprep.subr.mxu0 0.0
    %400 = vmatpush1.msra.mxu0 0.0
    %401 = vmatprep.mubr.f32.mxu0 %v335
    %402 = vmatmul.mubr.f32.gmra.mrb[0].mxu0 %v303
    %v403 = vpop.f32.mrb[0].mxu0
    %v404 = vadd.f32 %v333, %v403
    %v405 = vpop.f32.mrb[0].mxu0
    %406 = vdwg.mxu0
    %v407 = vtanh.pop %v404
    %408 = vst [vmem:[%s4] sm:$0xff] %v407
    // Predicated region
    $region30: #{_forward.1} parent=1 // pred_check
      _
    $region31: #{_forward.1} parent=1 // pred_check_branch
      %410 = sbr.rel (0) target = $region33
    $region32: #{_forward.1} parent=1 // pred_region
      _
    $region33: #{_forward.1} parent=1 // pred_fallthru
      _
    // Predicated region
    $region34: #{_forward.1} parent=1 // pred_check
      _
    $region35: #{_forward.1} parent=1 // pred_check_branch
      %412 = sbr.rel (0) target = $region37
    $region36: #{_forward.1} parent=1 // pred_region
      _
    $region37: #{_forward.1} parent=1 // pred_fallthru
      _
    %413 = vsyncpa [#allocation3], 1
    %414 = vsyncpa [#allocation5], 1

</llo_original>
